<compile_context>
chip_gen: v6e
topology: v6e:2x2x1
jax: 0.10.0
libtpu: 0.0.40
codegen_flags: <defaults>
</compile_context>

<pallas_src>
import functools

import jax
import jax.numpy as jnp
from jax.experimental import pallas as pl
from jax.experimental.pallas import tpu as pltpu


_PALLAS_MIN_BATCH = 4096    # below this a fused XLA pass is strictly faster
_DEFAULT_TILE_B = 16384     # rows/grid step: ~3.7 MiB per input block at f_aug=56,
                            # ~15 MiB double-buffered -> fits all of v5e/v6e/v7x


def _round_up(x, m):
    return ((x + m - 1) // m) * m


def _mf_kernel(u_ref, m_ref, out_ref):
    """One (tb, f_aug) tile of gathered user/movie rows (batch on sublanes,
    factors on lanes).  Elementwise multiply, reduce over the lane (factor)
    axis, add the 3.5 global offset.  Biases are already folded into the
    augmented factor columns, so no extra inputs or adds are needed."""
    prod = u_ref[...] * m_ref[...]                                              # (tb, f_aug), VPU
    out_ref[...] = jnp.sum(prod, axis=-1, keepdims=True) + jnp.float32(3.5)     # (tb, 1)


def init_params(key, n_users, n_movies, n_factors=50):
    """Deterministic parameter init mirroring the PyTorch __init__."""
    k_u, k_m = jax.random.split(key)
    return {
        "user_embeddings": 0.1 * jax.random.normal(k_u, (n_users, n_factors), jnp.float32),
        "movie_embeddings": 0.1 * jax.random.normal(k_m, (n_movies, n_factors), jnp.float32),
        "user_biases": jnp.zeros((n_users, 1), jnp.float32),
        "movie_biases": jnp.zeros((n_movies, 1), jnp.float32),
    }


def _augmented_tables(params):
    """Fold biases into the factor axis so that
         sum(u_aug * m_aug, factor) == dot(u_emb, m_emb) + u_bias + m_bias.
    The factor axis is zero-padded to a multiple of 8 (sublane alignment)."""
    u_emb = params["user_embeddings"]
    m_emb = params["movie_embeddings"]
    u_bias = params["user_biases"]
    m_bias = params["movie_biases"]
    n_users, n_factors = u_emb.shape
    n_movies = m_emb.shape[0]
    f_aug = _round_up(n_factors + 2, 8)
    pad = f_aug - (n_factors + 2)
    u_aug = jnp.concatenate(
        [u_emb, u_bias, jnp.ones((n_users, 1), u_emb.dtype),
         jnp.zeros((n_users, pad), u_emb.dtype)], axis=1)          # (n_users, f_aug)
    m_aug = jnp.concatenate(
        [m_emb, jnp.ones((n_movies, 1), m_emb.dtype), m_bias,
         jnp.zeros((n_movies, pad), m_emb.dtype)], axis=1)         # (n_movies, f_aug)
    return u_aug, m_aug


@functools.partial(jax.jit, static_argnames=("tile_b",))
def _forward_pallas(params, user_indices, movie_indices, tile_b=_DEFAULT_TILE_B):
    batch = user_indices.shape[0]
    u_aug, m_aug = _augmented_tables(params)
    f_aug = u_aug.shape[1]

    # Pad the batch to a multiple of 128 ONLY (<=127 dummy rows).  The grid
    # uses cdiv with a (masked) partial final block instead of padding the
    # arrays up to the tile size.
    batch_p = _round_up(batch, 128)
    pad_n = batch_p - batch
    u_idx = jnp.pad(user_indices.astype(jnp.int32), (0, pad_n))    # pads with valid index 0
    m_idx = jnp.pad(movie_indices.astype(jnp.int32), (0, pad_n))

    tb = min(tile_b, batch_p)
    grid = (pl.cdiv(batch_p, tb),)

    # Row gather only -- NO wrapper-side transpose.  The kernel consumes the
    # gathered rows in their natural (batch, f_aug) layout; allow_input_fusion
    # lets XLA fuse the gather directly into the pallas operands.
    u_g = jnp.take(u_aug, u_idx, axis=0)                            # (batch_p, f_aug)
    m_g = jnp.take(m_aug, m_idx, axis=0)                            # (batch_p, f_aug)

    out = pl.pallas_call(
        _mf_kernel,
        out_shape=jax.ShapeDtypeStruct((batch_p, 1), jnp.float32),
        grid=grid,
        in_specs=[
            pl.BlockSpec((tb, f_aug), lambda i: (i, 0)),
            pl.BlockSpec((tb, f_aug), lambda i: (i, 0)),
        ],
        out_specs=pl.BlockSpec((tb, 1), lambda i: (i, 0)),
        compiler_params=pltpu.CompilerParams(
            dimension_semantics=("parallel",),        # independent batch tiles
            vmem_limit_bytes=48 * 1024 * 1024,        # < v7x 64 MiB physical; fine on v5e/v6e
            allow_input_fusion=[True, True],          # fuse gather into operands if possible
        ),
        cost_estimate=pl.CostEstimate(
            flops=2 * batch_p * f_aug,
            transcendentals=0,
            # table-gather reads + pallas operand reads + output + index reads
            bytes_accessed=(4 * batch_p * f_aug + batch_p + 2 * batch_p) * 4,
        ),
    )(u_g, m_g)
    return out[:batch, 0]


@jax.jit
def _forward_xla(params, user_indices, movie_indices):
    """Fused XLA path for small batches where pallas launch overhead dominates."""
    u = jnp.take(params["user_embeddings"], user_indices, axis=0)
    m = jnp.take(params["movie_embeddings"], movie_indices, axis=0)
    u_b = jnp.take(params["user_biases"], user_indices, axis=0)[:, 0]
    m_b = jnp.take(params["movie_biases"], movie_indices, axis=0)[:, 0]
    return jnp.sum(u * m, axis=1) + u_b + m_b + jnp.float32(3.5)


def matrix_factorization_forward(params, user_indices, movie_indices, use_pallas=None):
    """Matches PyTorch MatrixFactorization.forward: returns (B,) predicted ratings."""
    if use_pallas is None:
        use_pallas = user_indices.shape[0] >= _PALLAS_MIN_BATCH
    if use_pallas:
        return _forward_pallas(params, user_indices, movie_indices)
    return _forward_xla(params, user_indices, movie_indices)


if __name__ == "__main__":
    n_users, n_movies, n_factors = 16, 24, 32
    batch = 8

    key = jax.random.PRNGKey(0)
    k_params, k_u_idx, k_m_idx = jax.random.split(key, 3)

    params = init_params(k_params, n_users, n_movies, n_factors)
    user_indices = jax.random.randint(k_u_idx, (batch,), 0, n_users, dtype=jnp.int32)
    movie_indices = jax.random.randint(k_m_idx, (batch,), 0, n_movies, dtype=jnp.int32)

    # Force the Pallas path so the kernel is exercised even at this tiny batch.
    pred = matrix_factorization_forward(params, user_indices, movie_indices, use_pallas=True)
    pred = jax.block_until_ready(pred)

    # Pure-JAX reference of the same forward semantics.
    u = params["user_embeddings"][user_indices]
    m = params["movie_embeddings"][movie_indices]
    ref = (jnp.sum(u * m, axis=1)
           + params["user_biases"][user_indices].squeeze()
           + params["movie_biases"][movie_indices].squeeze()
           + 3.5)
    assert pred.shape == (batch,)
    assert jnp.allclose(pred, ref, atol=1e-5, rtol=1e-5)

    # Also sanity-check the auto-dispatch (small-batch XLA path).
    pred_small = matrix_factorization_forward(params, user_indices, movie_indices)
    assert jnp.allclose(jax.block_until_ready(pred_small), ref, atol=1e-5, rtol=1e-5)

    print("KERNEL_OK")
</pallas_src>

<mosaic_0001>
module attributes {stable_mosaic.version = 11 : i64} {
  func.func @_mf_kernel(%arg0: i32, %arg1: memref<128x40xf32, #tpu.memory_space<vmem>>, %arg2: memref<128x40xf32, #tpu.memory_space<vmem>>, %arg3: memref<128x1xf32, #tpu.memory_space<vmem>>) attributes {dimension_semantics = [#tpu.dimension_semantics<parallel>], iteration_bounds = array<i64: 1>, scalar_prefetch = 0 : i64, scratch_operands = 0 : i64, tpu.core_type = #tpu.core_type<tc>, window_params = [{transform_indices = @transform_0, window_bounds = array<i64: 128, 40>}, {transform_indices = @transform_1, window_bounds = array<i64: 128, 40>}, {transform_indices = @transform_2, window_bounds = array<i64: 128, 1>}]} {
    %c0 = arith.constant 0 : index
    %c0_0 = arith.constant 0 : index
    %0 = vector.load %arg1[%c0, %c0_0] : memref<128x40xf32, #tpu.memory_space<vmem>>, vector<128x40xf32>
    %c0_1 = arith.constant 0 : index
    %c0_2 = arith.constant 0 : index
    %1 = vector.load %arg2[%c0_1, %c0_2] : memref<128x40xf32, #tpu.memory_space<vmem>>, vector<128x40xf32>
    %2 = arith.mulf %0, %1 : vector<128x40xf32>
    %cst = arith.constant dense<0.000000e+00> : vector<128xf32>
    %3 = vector.multi_reduction <add>, %2, %cst [1] : vector<128x40xf32> to vector<128xf32>
    %4 = vector.shape_cast %3 : vector<128xf32> to vector<128x1xf32>
    %cst_3 = arith.constant 3.500000e+00 : f32
    %5 = vector.broadcast %cst_3 : f32 to vector<128x1xf32>
    %6 = arith.addf %4, %5 : vector<128x1xf32>
    %c0_4 = arith.constant 0 : index
    %c0_5 = arith.constant 0 : index
    %7 = vector.load %arg3[%c0_4, %c0_5] : memref<128x1xf32, #tpu.memory_space<vmem>>, vector<128x1xf32>
    tpu.vector_store %arg3[%c0_4, %c0_5], %6 {strides = array<i32>} : memref<128x1xf32, #tpu.memory_space<vmem>>, vector<128x1xf32>,
    return
  }
  func.func @transform_0(%arg0: i32) -> (i32, i32) {
    %c0_i32 = arith.constant 0 : i32
    %c0_i32_0 = arith.constant 0 : i32
    return %arg0, %c0_i32 : i32, i32
  }
  func.func @transform_1(%arg0: i32) -> (i32, i32) {
    %c0_i32 = arith.constant 0 : i32
    %c0_i32_0 = arith.constant 0 : i32
    return %arg0, %c0_i32 : i32, i32
  }
  func.func @transform_2(%arg0: i32) -> (i32, i32) {
    %c0_i32 = arith.constant 0 : i32
    %c0_i32_0 = arith.constant 0 : i32
    return %arg0, %c0_i32 : i32, i32
  }
}

</mosaic_0001>

<llo_original>
// kernel: _forward_pallas.2
$region0: #{_forward_pallas.2}
  #allocation0 [shape = 'u32[]', space=smem, size = 0x4, offset = 0x4, fixed_abs, tag = 'smem constant byte address 0x4 - core index']
  #allocation1 [shape = 'u32[144,128]{1,0:T(1,128)}', space=vmem, size = 0x12000, scoped, tag = 'internal scratch']
  %s0 = inlined_call_operand.vmem [shape: f32[128,40], index: 0, kind: input, shape index: {}]
  %s1 = inlined_call_operand.vmem [shape: f32[128,40], index: 1, kind: input, shape index: {}]
  %s2 = inlined_call_operand.<no memory space> [shape: f32[], index: 2, kind: input, shape index: {}]
  %s3 = inlined_call_operand.vmem [shape: pred[128], index: 3, kind: input, shape index: {}]
  %s4 = inlined_call_operand.vmem [shape: pred[128], index: 4, kind: input, shape index: {}]
  %s5 = inlined_call_operand.vmem [shape: f32[128,1], index: 5, kind: output, shape index: {}]
  %s6 = sld [smem:[#allocation0]]
  $region26: #{_forward_pallas.2} parent=0
    _
  %s8 = ssub.s32 1, %s6
  %s9 = scalar_select 0, %s8, %s6
  %v10 = vstv %s2
  %v11 = vstv %s2
  $region1: #{_forward_pallas.2} parent=0
    #allocation2 [shape = 'u8[65536]{0}', space=vmem, size = 0x10000, dematerialized = true, scoped, tag = 'FusionAdapter Buffer %fusion.2 = f32[128,40]{1,0:T(8,128)} fusion(%param_1.17, %param_2.9, %param_4.3), kind=kLoop, calls=%fused_computation.4.clone, metadata={op_name="jit(_forward_pallas)/jit(_take)/select_n" stack_frame_id=15}']
    #allocation3 [shape = 'u8[65536]{0}', space=vmem, size = 0x10000, dematerialized = true, scoped, tag = 'FusionAdapter Buffer %fusion.1 = f32[128,40]{1,0:T(8,128)} fusion(%param_0.13, %param_2.9, %param_3.4), kind=kLoop, calls=%fused_computation.3.clone, metadata={op_name="jit(_forward_pallas)/jit(_take)/select_n" stack_frame_id=16}']
    // Predicated region
    $region2: #{_forward_pallas.2} parent=1 // pred_check
      _
    $region3: #{_forward_pallas.2} parent=1 // pred_check_branch
      %13 = sbr.rel (0) target = $region5
    $region4: #{_forward_pallas.2} parent=1 // pred_region
      _
    $region5: #{_forward_pallas.2} parent=1 // pred_fallthru
      _
    // Predicated region
    $region6: #{_forward_pallas.2} parent=1 // pred_check
      _
    $region7: #{_forward_pallas.2} parent=1 // pred_check_branch
      %15 = sbr.rel (0) target = $region9
    $region8: #{_forward_pallas.2} parent=1 // pred_region
      _
    $region9: #{_forward_pallas.2} parent=1 // pred_fallthru
      _
    // Predicated region
    $region10: #{_forward_pallas.2} parent=1 // pred_check
      _
    $region11: #{_forward_pallas.2} parent=1 // pred_check_branch
      %17 = sbr.rel (0) target = $region13
    $region12: #{_forward_pallas.2} parent=1 // pred_region
      _
    $region13: #{_forward_pallas.2} parent=1 // pred_fallthru
      _
    // Predicated region
    $region14: #{_forward_pallas.2} parent=1 // pred_check
      _
    $region15: #{_forward_pallas.2} parent=1 // pred_check_branch
      %19 = sbr.rel (0) target = $region17
    $region16: #{_forward_pallas.2} parent=1 // pred_region
      _
    $region17: #{_forward_pallas.2} parent=1 // pred_fallthru
      _
    %v20 = vld [vmem:[%s1] sm:$0xff]
    %v21 = vld [vmem:[%s4] ss:$0 sm:$0xff]
    %v23 = vshra.s32 %v21, 0
    %v24 = vand.u32 %v23, 255
    %26 = vbcast.lane.b32.xlu0 %v24, 256
    %v27 = vpop.permute.xlu0 %26
    %28 = xla_tuple %v27, %v20, %v10
    %29 = xla_tuple %28
    %vm30 = vcmp.ne.s32.totalorder %v27, 0
    %v31 = vsel %vm30, %v20, %v10
    %32 = xla_tuple %v31
    %s34 = ssub.s32 256, 1
    %35 = vst [vmem:[#allocation2] sm:%s34] %v31
    %s36 = scalar_lea.vmem %s1, 8
    %v37 = vld [vmem:[%s36] sm:$0xff]
    %v38 = vld [vmem:[%s4] ss:$0 sm:$0xff]
    %v40 = vshra.s32 %v38, 0
    %v41 = vand.u32 %v40, 255
    %s43 = sor.u32 256, 8
    %44 = vbcast.lane.b32.xlu0 %v41, %s43
    %v45 = vpop.permute.xlu0 %44
    %46 = xla_tuple %v45, %v37, %v10
    %47 = xla_tuple %46
    %vm48 = vcmp.ne.s32.totalorder %v45, 0
    %v49 = vsel %vm48, %v37, %v10
    %50 = xla_tuple %v49
    %s51 = scalar_lea.vmem [#allocation2], 8
    %s53 = ssub.s32 256, 1
    %54 = vst [vmem:[%s51] sm:%s53] %v49
    %s55 = scalar_lea.vmem %s1, 16
    %v56 = vld [vmem:[%s55] sm:$0xff]
    %v57 = vld [vmem:[%s4] ss:$0 sm:$0xff]
    %v59 = vshra.s32 %v57, 0
    %v60 = vand.u32 %v59, 255
    %s62 = sor.u32 256, 16
    %63 = vbcast.lane.b32.xlu0 %v60, %s62
    %v64 = vpop.permute.xlu0 %63
    %65 = xla_tuple %v64, %v56, %v10
    %66 = xla_tuple %65
    %vm67 = vcmp.ne.s32.totalorder %v64, 0
    %v68 = vsel %vm67, %v56, %v10
    %69 = xla_tuple %v68
    %s70 = scalar_lea.vmem [#allocation2], 16
    %s72 = ssub.s32 256, 1
    %73 = vst [vmem:[%s70] sm:%s72] %v68
    %s74 = scalar_lea.vmem %s1, 24
    %v75 = vld [vmem:[%s74] sm:$0xff]
    %v76 = vld [vmem:[%s4] ss:$0 sm:$0xff]
    %v78 = vshra.s32 %v76, 0
    %v79 = vand.u32 %v78, 255
    %s81 = sor.u32 256, 24
    %82 = vbcast.lane.b32.xlu0 %v79, %s81
    %v83 = vpop.permute.xlu0 %82
    %84 = xla_tuple %v83, %v75, %v10
    %85 = xla_tuple %84
    %vm86 = vcmp.ne.s32.totalorder %v83, 0
    %v87 = vsel %vm86, %v75, %v10
    %88 = xla_tuple %v87
    %s89 = scalar_lea.vmem [#allocation2], 24
    %s91 = ssub.s32 256, 1
    %92 = vst [vmem:[%s89] sm:%s91] %v87
    %s93 = scalar_lea.vmem %s1, 32
    %v94 = vld [vmem:[%s93] sm:$0xff]
    %v95 = vld [vmem:[%s4] ss:$0 sm:$0xff]
    %v97 = vshra.s32 %v95, 0
    %v98 = vand.u32 %v97, 255
    %s100 = sor.u32 256, 32
    %101 = vbcast.lane.b32.xlu0 %v98, %s100
    %v102 = vpop.permute.xlu0 %101
    %103 = xla_tuple %v102, %v94, %v10
    %104 = xla_tuple %103
    %vm105 = vcmp.ne.s32.totalorder %v102, 0
    %v106 = vsel %vm105, %v94, %v10
    %107 = xla_tuple %v106
    %s108 = scalar_lea.vmem [#allocation2], 32
    %s110 = ssub.s32 256, 1
    %111 = vst [vmem:[%s108] sm:%s110] %v106
    %s112 = scalar_lea.vmem %s1, 40
    %v113 = vld [vmem:[%s112] sm:$0xff]
    %v114 = vld [vmem:[%s4] ss:$0 sm:$0xff]
    %v116 = vshra.s32 %v114, 0
    %v117 = vand.u32 %v116, 255
    %s119 = sor.u32 256, 40
    %120 = vbcast.lane.b32.xlu0 %v117, %s119
    %v121 = vpop.permute.xlu0 %120
    %122 = xla_tuple %v121, %v113, %v10
    %123 = xla_tuple %122
    %vm124 = vcmp.ne.s32.totalorder %v121, 0
    %v125 = vsel %vm124, %v113, %v10
    %126 = xla_tuple %v125
    %s127 = scalar_lea.vmem [#allocation2], 40
    %s129 = ssub.s32 256, 1
    %130 = vst [vmem:[%s127] sm:%s129] %v125
    %s131 = scalar_lea.vmem %s1, 48
    %v132 = vld [vmem:[%s131] sm:$0xff]
    %v133 = vld [vmem:[%s4] ss:$0 sm:$0xff]
    %v135 = vshra.s32 %v133, 0
    %v136 = vand.u32 %v135, 255
    %s138 = sor.u32 256, 48
    %139 = vbcast.lane.b32.xlu0 %v136, %s138
    %v140 = vpop.permute.xlu0 %139
    %141 = xla_tuple %v140, %v132, %v10
    %142 = xla_tuple %141
    %vm143 = vcmp.ne.s32.totalorder %v140, 0
    %v144 = vsel %vm143, %v132, %v10
    %145 = xla_tuple %v144
    %s146 = scalar_lea.vmem [#allocation2], 48
    %s148 = ssub.s32 256, 1
    %149 = vst [vmem:[%s146] sm:%s148] %v144
    %s150 = scalar_lea.vmem %s1, 56
    %v151 = vld [vmem:[%s150] sm:$0xff]
    %v152 = vld [vmem:[%s4] ss:$0 sm:$0xff]
    %v154 = vshra.s32 %v152, 0
    %v155 = vand.u32 %v154, 255
    %s157 = sor.u32 256, 56
    %158 = vbcast.lane.b32.xlu0 %v155, %s157
    %v159 = vpop.permute.xlu0 %158
    %160 = xla_tuple %v159, %v151, %v10
    %161 = xla_tuple %160
    %vm162 = vcmp.ne.s32.totalorder %v159, 0
    %v163 = vsel %vm162, %v151, %v10
    %164 = xla_tuple %v163
    %s165 = scalar_lea.vmem [#allocation2], 56
    %s167 = ssub.s32 256, 1
    %168 = vst [vmem:[%s165] sm:%s167] %v163
    %s169 = scalar_lea.vmem %s1, 64
    %v170 = vld [vmem:[%s169] sm:$0xff]
    %v171 = vld [vmem:[%s4] ss:$0 sm:$0xff]
    %v173 = vshra.s32 %v171, 0
    %v174 = vand.u32 %v173, 255
    %s176 = sor.u32 256, 64
    %177 = vbcast.lane.b32.xlu0 %v174, %s176
    %v178 = vpop.permute.xlu0 %177
    %179 = xla_tuple %v178, %v170, %v10
    %180 = xla_tuple %179
    %vm181 = vcmp.ne.s32.totalorder %v178, 0
    %v182 = vsel %vm181, %v170, %v10
    %183 = xla_tuple %v182
    %s184 = scalar_lea.vmem [#allocation2], 64
    %s186 = ssub.s32 256, 1
    %187 = vst [vmem:[%s184] sm:%s186] %v182
    %s188 = scalar_lea.vmem %s1, 72
    %v189 = vld [vmem:[%s188] sm:$0xff]
    %v190 = vld [vmem:[%s4] ss:$0 sm:$0xff]
    %v192 = vshra.s32 %v190, 0
    %v193 = vand.u32 %v192, 255
    %s195 = sor.u32 256, 72
    %196 = vbcast.lane.b32.xlu0 %v193, %s195
    %v197 = vpop.permute.xlu0 %196
    %198 = xla_tuple %v197, %v189, %v10
    %199 = xla_tuple %198
    %vm200 = vcmp.ne.s32.totalorder %v197, 0
    %v201 = vsel %vm200, %v189, %v10
    %202 = xla_tuple %v201
    %s203 = scalar_lea.vmem [#allocation2], 72
    %s205 = ssub.s32 256, 1
    %206 = vst [vmem:[%s203] sm:%s205] %v201
    %s207 = scalar_lea.vmem %s1, 80
    %v208 = vld [vmem:[%s207] sm:$0xff]
    %v209 = vld [vmem:[%s4] ss:$0 sm:$0xff]
    %v211 = vshra.s32 %v209, 0
    %v212 = vand.u32 %v211, 255
    %s214 = sor.u32 256, 80
    %215 = vbcast.lane.b32.xlu0 %v212, %s214
    %v216 = vpop.permute.xlu0 %215
    %217 = xla_tuple %v216, %v208, %v10
    %218 = xla_tuple %217
    %vm219 = vcmp.ne.s32.totalorder %v216, 0
    %v220 = vsel %vm219, %v208, %v10
    %221 = xla_tuple %v220
    %s222 = scalar_lea.vmem [#allocation2], 80
    %s224 = ssub.s32 256, 1
    %225 = vst [vmem:[%s222] sm:%s224] %v220
    %s226 = scalar_lea.vmem %s1, 88
    %v227 = vld [vmem:[%s226] sm:$0xff]
    %v228 = vld [vmem:[%s4] ss:$0 sm:$0xff]
    %v230 = vshra.s32 %v228, 0
    %v231 = vand.u32 %v230, 255
    %s233 = sor.u32 256, 88
    %234 = vbcast.lane.b32.xlu0 %v231, %s233
    %v235 = vpop.permute.xlu0 %234
    %236 = xla_tuple %v235, %v227, %v10
    %237 = xla_tuple %236
    %vm238 = vcmp.ne.s32.totalorder %v235, 0
    %v239 = vsel %vm238, %v227, %v10
    %240 = xla_tuple %v239
    %s241 = scalar_lea.vmem [#allocation2], 88
    %s243 = ssub.s32 256, 1
    %244 = vst [vmem:[%s241] sm:%s243] %v239
    %s245 = scalar_lea.vmem %s1, 96
    %v246 = vld [vmem:[%s245] sm:$0xff]
    %v247 = vld [vmem:[%s4] ss:$0 sm:$0xff]
    %v249 = vshra.s32 %v247, 0
    %v250 = vand.u32 %v249, 255
    %s252 = sor.u32 256, 96
    %253 = vbcast.lane.b32.xlu0 %v250, %s252
    %v254 = vpop.permute.xlu0 %253
    %255 = xla_tuple %v254, %v246, %v10
    %256 = xla_tuple %255
    %vm257 = vcmp.ne.s32.totalorder %v254, 0
    %v258 = vsel %vm257, %v246, %v10
    %259 = xla_tuple %v258
    %s260 = scalar_lea.vmem [#allocation2], 96
    %s262 = ssub.s32 256, 1
    %263 = vst [vmem:[%s260] sm:%s262] %v258
    %s264 = scalar_lea.vmem %s1, 104
    %v265 = vld [vmem:[%s264] sm:$0xff]
    %v266 = vld [vmem:[%s4] ss:$0 sm:$0xff]
    %v268 = vshra.s32 %v266, 0
    %v269 = vand.u32 %v268, 255
    %s271 = sor.u32 256, 104
    %272 = vbcast.lane.b32.xlu0 %v269, %s271
    %v273 = vpop.permute.xlu0 %272
    %274 = xla_tuple %v273, %v265, %v10
    %275 = xla_tuple %274
    %vm276 = vcmp.ne.s32.totalorder %v273, 0
    %v277 = vsel %vm276, %v265, %v10
    %278 = xla_tuple %v277
    %s279 = scalar_lea.vmem [#allocation2], 104
    %s281 = ssub.s32 256, 1
    %282 = vst [vmem:[%s279] sm:%s281] %v277
    %s283 = scalar_lea.vmem %s1, 112
    %v284 = vld [vmem:[%s283] sm:$0xff]
    %v285 = vld [vmem:[%s4] ss:$0 sm:$0xff]
    %v287 = vshra.s32 %v285, 0
    %v288 = vand.u32 %v287, 255
    %s290 = sor.u32 256, 112
    %291 = vbcast.lane.b32.xlu0 %v288, %s290
    %v292 = vpop.permute.xlu0 %291
    %293 = xla_tuple %v292, %v284, %v10
    %294 = xla_tuple %293
    %vm295 = vcmp.ne.s32.totalorder %v292, 0
    %v296 = vsel %vm295, %v284, %v10
    %297 = xla_tuple %v296
    %s298 = scalar_lea.vmem [#allocation2], 112
    %s300 = ssub.s32 256, 1
    %301 = vst [vmem:[%s298] sm:%s300] %v296
    %s302 = scalar_lea.vmem %s1, 120
    %v303 = vld [vmem:[%s302] sm:$0xff]
    %v304 = vld [vmem:[%s4] ss:$0 sm:$0xff]
    %v306 = vshra.s32 %v304, 0
    %v307 = vand.u32 %v306, 255
    %s309 = sor.u32 256, 120
    %310 = vbcast.lane.b32.xlu0 %v307, %s309
    %v311 = vpop.permute.xlu0 %310
    %312 = xla_tuple %v311, %v303, %v10
    %313 = xla_tuple %312
    %vm314 = vcmp.ne.s32.totalorder %v311, 0
    %v315 = vsel %vm314, %v303, %v10
    %316 = xla_tuple %v315
    %s317 = scalar_lea.vmem [#allocation2], 120
    %s319 = ssub.s32 256, 1
    %320 = vst [vmem:[%s317] sm:%s319] %v315
    %v321 = vld [vmem:[%s0] sm:$0xff]
    %v322 = vld [vmem:[%s3] ss:$0 sm:$0xff]
    %v324 = vshra.s32 %v322, 0
    %v325 = vand.u32 %v324, 255
    %327 = vbcast.lane.b32.xlu0 %v325, 256
    %v328 = vpop.permute.xlu0 %327
    %329 = xla_tuple %v328, %v321, %v11
    %330 = xla_tuple %329
    %vm331 = vcmp.ne.s32.totalorder %v328, 0
    %v332 = vsel %vm331, %v321, %v11
    %333 = xla_tuple %v332
    %s335 = ssub.s32 256, 1
    %336 = vst [vmem:[#allocation3] sm:%s335] %v332
    %s337 = scalar_lea.vmem %s0, 8
    %v338 = vld [vmem:[%s337] sm:$0xff]
    %v339 = vld [vmem:[%s3] ss:$0 sm:$0xff]
    %v341 = vshra.s32 %v339, 0
    %v342 = vand.u32 %v341, 255
    %s344 = sor.u32 256, 8
    %345 = vbcast.lane.b32.xlu0 %v342, %s344
    %v346 = vpop.permute.xlu0 %345
    %347 = xla_tuple %v346, %v338, %v11
    %348 = xla_tuple %347
    %vm349 = vcmp.ne.s32.totalorder %v346, 0
    %v350 = vsel %vm349, %v338, %v11
    %351 = xla_tuple %v350
    %s352 = scalar_lea.vmem [#allocation3], 8
    %s354 = ssub.s32 256, 1
    %355 = vst [vmem:[%s352] sm:%s354] %v350
    %s356 = scalar_lea.vmem %s0, 16
    %v357 = vld [vmem:[%s356] sm:$0xff]
    %v358 = vld [vmem:[%s3] ss:$0 sm:$0xff]
    %v360 = vshra.s32 %v358, 0
    %v361 = vand.u32 %v360, 255
    %s363 = sor.u32 256, 16
    %364 = vbcast.lane.b32.xlu0 %v361, %s363
    %v365 = vpop.permute.xlu0 %364
    %366 = xla_tuple %v365, %v357, %v11
    %367 = xla_tuple %366
    %vm368 = vcmp.ne.s32.totalorder %v365, 0
    %v369 = vsel %vm368, %v357, %v11
    %370 = xla_tuple %v369
    %s371 = scalar_lea.vmem [#allocation3], 16
    %s373 = ssub.s32 256, 1
    %374 = vst [vmem:[%s371] sm:%s373] %v369
    %s375 = scalar_lea.vmem %s0, 24
    %v376 = vld [vmem:[%s375] sm:$0xff]
    %v377 = vld [vmem:[%s3] ss:$0 sm:$0xff]
    %v379 = vshra.s32 %v377, 0
    %v380 = vand.u32 %v379, 255
    %s382 = sor.u32 256, 24
    %383 = vbcast.lane.b32.xlu0 %v380, %s382
    %v384 = vpop.permute.xlu0 %383
    %385 = xla_tuple %v384, %v376, %v11
    %386 = xla_tuple %385
    %vm387 = vcmp.ne.s32.totalorder %v384, 0
    %v388 = vsel %vm387, %v376, %v11
    %389 = xla_tuple %v388
    %s390 = scalar_lea.vmem [#allocation3], 24
    %s392 = ssub.s32 256, 1
    %393 = vst [vmem:[%s390] sm:%s392] %v388
    %s394 = scalar_lea.vmem %s0, 32
    %v395 = vld [vmem:[%s394] sm:$0xff]
    %v396 = vld [vmem:[%s3] ss:$0 sm:$0xff]
    %v398 = vshra.s32 %v396, 0
    %v399 = vand.u32 %v398, 255
    %s401 = sor.u32 256, 32
    %402 = vbcast.lane.b32.xlu0 %v399, %s401
    %v403 = vpop.permute.xlu0 %402
    %404 = xla_tuple %v403, %v395, %v11
    %405 = xla_tuple %404
    %vm406 = vcmp.ne.s32.totalorder %v403, 0
    %v407 = vsel %vm406, %v395, %v11
    %408 = xla_tuple %v407
    %s409 = scalar_lea.vmem [#allocation3], 32
    %s411 = ssub.s32 256, 1
    %412 = vst [vmem:[%s409] sm:%s411] %v407
    %s413 = scalar_lea.vmem %s0, 40
    %v414 = vld [vmem:[%s413] sm:$0xff]
    %v415 = vld [vmem:[%s3] ss:$0 sm:$0xff]
    %v417 = vshra.s32 %v415, 0
    %v418 = vand.u32 %v417, 255
    %s420 = sor.u32 256, 40
    %421 = vbcast.lane.b32.xlu0 %v418, %s420
    %v422 = vpop.permute.xlu0 %421
    %423 = xla_tuple %v422, %v414, %v11
    %424 = xla_tuple %423
    %vm425 = vcmp.ne.s32.totalorder %v422, 0
    %v426 = vsel %vm425, %v414, %v11
    %427 = xla_tuple %v426
    %s428 = scalar_lea.vmem [#allocation3], 40
    %s430 = ssub.s32 256, 1
    %431 = vst [vmem:[%s428] sm:%s430] %v426
    %s432 = scalar_lea.vmem %s0, 48
    %v433 = vld [vmem:[%s432] sm:$0xff]
    %v434 = vld [vmem:[%s3] ss:$0 sm:$0xff]
    %v436 = vshra.s32 %v434, 0
    %v437 = vand.u32 %v436, 255
    %s439 = sor.u32 256, 48
    %440 = vbcast.lane.b32.xlu0 %v437, %s439
    %v441 = vpop.permute.xlu0 %440
    %442 = xla_tuple %v441, %v433, %v11
    %443 = xla_tuple %442
    %vm444 = vcmp.ne.s32.totalorder %v441, 0
    %v445 = vsel %vm444, %v433, %v11
    %446 = xla_tuple %v445
    %s447 = scalar_lea.vmem [#allocation3], 48
    %s449 = ssub.s32 256, 1
    %450 = vst [vmem:[%s447] sm:%s449] %v445
    %s451 = scalar_lea.vmem %s0, 56
    %v452 = vld [vmem:[%s451] sm:$0xff]
    %v453 = vld [vmem:[%s3] ss:$0 sm:$0xff]
    %v455 = vshra.s32 %v453, 0
    %v456 = vand.u32 %v455, 255
    %s458 = sor.u32 256, 56
    %459 = vbcast.lane.b32.xlu0 %v456, %s458
    %v460 = vpop.permute.xlu0 %459
    %461 = xla_tuple %v460, %v452, %v11
    %462 = xla_tuple %461
    %vm463 = vcmp.ne.s32.totalorder %v460, 0
    %v464 = vsel %vm463, %v452, %v11
    %465 = xla_tuple %v464
    %s466 = scalar_lea.vmem [#allocation3], 56
    %s468 = ssub.s32 256, 1
    %469 = vst [vmem:[%s466] sm:%s468] %v464
    %s470 = scalar_lea.vmem %s0, 64
    %v471 = vld [vmem:[%s470] sm:$0xff]
    %v472 = vld [vmem:[%s3] ss:$0 sm:$0xff]
    %v474 = vshra.s32 %v472, 0
    %v475 = vand.u32 %v474, 255
    %s477 = sor.u32 256, 64
    %478 = vbcast.lane.b32.xlu0 %v475, %s477
    %v479 = vpop.permute.xlu0 %478
    %480 = xla_tuple %v479, %v471, %v11
    %481 = xla_tuple %480
    %vm482 = vcmp.ne.s32.totalorder %v479, 0
    %v483 = vsel %vm482, %v471, %v11
    %484 = xla_tuple %v483
    %s485 = scalar_lea.vmem [#allocation3], 64
    %s487 = ssub.s32 256, 1
    %488 = vst [vmem:[%s485] sm:%s487] %v483
    %s489 = scalar_lea.vmem %s0, 72
    %v490 = vld [vmem:[%s489] sm:$0xff]
    %v491 = vld [vmem:[%s3] ss:$0 sm:$0xff]
    %v493 = vshra.s32 %v491, 0
    %v494 = vand.u32 %v493, 255
    %s496 = sor.u32 256, 72
    %497 = vbcast.lane.b32.xlu0 %v494, %s496
    %v498 = vpop.permute.xlu0 %497
    %499 = xla_tuple %v498, %v490, %v11
    %500 = xla_tuple %499
    %vm501 = vcmp.ne.s32.totalorder %v498, 0
    %v502 = vsel %vm501, %v490, %v11
    %503 = xla_tuple %v502
    %s504 = scalar_lea.vmem [#allocation3], 72
    %s506 = ssub.s32 256, 1
    %507 = vst [vmem:[%s504] sm:%s506] %v502
    %s508 = scalar_lea.vmem %s0, 80
    %v509 = vld [vmem:[%s508] sm:$0xff]
    %v510 = vld [vmem:[%s3] ss:$0 sm:$0xff]
    %v512 = vshra.s32 %v510, 0
    %v513 = vand.u32 %v512, 255
    %s515 = sor.u32 256, 80
    %516 = vbcast.lane.b32.xlu0 %v513, %s515
    %v517 = vpop.permute.xlu0 %516
    %518 = xla_tuple %v517, %v509, %v11
    %519 = xla_tuple %518
    %vm520 = vcmp.ne.s32.totalorder %v517, 0
    %v521 = vsel %vm520, %v509, %v11
    %522 = xla_tuple %v521
    %s523 = scalar_lea.vmem [#allocation3], 80
    %s525 = ssub.s32 256, 1
    %526 = vst [vmem:[%s523] sm:%s525] %v521
    %s527 = scalar_lea.vmem %s0, 88
    %v528 = vld [vmem:[%s527] sm:$0xff]
    %v529 = vld [vmem:[%s3] ss:$0 sm:$0xff]
    %v531 = vshra.s32 %v529, 0
    %v532 = vand.u32 %v531, 255
    %s534 = sor.u32 256, 88
    %535 = vbcast.lane.b32.xlu0 %v532, %s534
    %v536 = vpop.permute.xlu0 %535
    %537 = xla_tuple %v536, %v528, %v11
    %538 = xla_tuple %537
    %vm539 = vcmp.ne.s32.totalorder %v536, 0
    %v540 = vsel %vm539, %v528, %v11
    %541 = xla_tuple %v540
    %s542 = scalar_lea.vmem [#allocation3], 88
    %s544 = ssub.s32 256, 1
    %545 = vst [vmem:[%s542] sm:%s544] %v540
    %s546 = scalar_lea.vmem %s0, 96
    %v547 = vld [vmem:[%s546] sm:$0xff]
    %v548 = vld [vmem:[%s3] ss:$0 sm:$0xff]
    %v550 = vshra.s32 %v548, 0
    %v551 = vand.u32 %v550, 255
    %s553 = sor.u32 256, 96
    %554 = vbcast.lane.b32.xlu0 %v551, %s553
    %v555 = vpop.permute.xlu0 %554
    %556 = xla_tuple %v555, %v547, %v11
    %557 = xla_tuple %556
    %vm558 = vcmp.ne.s32.totalorder %v555, 0
    %v559 = vsel %vm558, %v547, %v11
    %560 = xla_tuple %v559
    %s561 = scalar_lea.vmem [#allocation3], 96
    %s563 = ssub.s32 256, 1
    %564 = vst [vmem:[%s561] sm:%s563] %v559
    %s565 = scalar_lea.vmem %s0, 104
    %v566 = vld [vmem:[%s565] sm:$0xff]
    %v567 = vld [vmem:[%s3] ss:$0 sm:$0xff]
    %v569 = vshra.s32 %v567, 0
    %v570 = vand.u32 %v569, 255
    %s572 = sor.u32 256, 104
    %573 = vbcast.lane.b32.xlu0 %v570, %s572
    %v574 = vpop.permute.xlu0 %573
    %575 = xla_tuple %v574, %v566, %v11
    %576 = xla_tuple %575
    %vm577 = vcmp.ne.s32.totalorder %v574, 0
    %v578 = vsel %vm577, %v566, %v11
    %579 = xla_tuple %v578
    %s580 = scalar_lea.vmem [#allocation3], 104
    %s582 = ssub.s32 256, 1
    %583 = vst [vmem:[%s580] sm:%s582] %v578
    %s584 = scalar_lea.vmem %s0, 112
    %v585 = vld [vmem:[%s584] sm:$0xff]
    %v586 = vld [vmem:[%s3] ss:$0 sm:$0xff]
    %v588 = vshra.s32 %v586, 0
    %v589 = vand.u32 %v588, 255
    %s591 = sor.u32 256, 112
    %592 = vbcast.lane.b32.xlu0 %v589, %s591
    %v593 = vpop.permute.xlu0 %592
    %594 = xla_tuple %v593, %v585, %v11
    %595 = xla_tuple %594
    %vm596 = vcmp.ne.s32.totalorder %v593, 0
    %v597 = vsel %vm596, %v585, %v11
    %598 = xla_tuple %v597
    %s599 = scalar_lea.vmem [#allocation3], 112
    %s601 = ssub.s32 256, 1
    %602 = vst [vmem:[%s599] sm:%s601] %v597
    %s603 = scalar_lea.vmem %s0, 120
    %v604 = vld [vmem:[%s603] sm:$0xff]
    %v605 = vld [vmem:[%s3] ss:$0 sm:$0xff]
    %v607 = vshra.s32 %v605, 0
    %v608 = vand.u32 %v607, 255
    %s610 = sor.u32 256, 120
    %611 = vbcast.lane.b32.xlu0 %v608, %s610
    %v612 = vpop.permute.xlu0 %611
    %613 = xla_tuple %v612, %v604, %v11
    %614 = xla_tuple %613
    %vm615 = vcmp.ne.s32.totalorder %v612, 0
    %v616 = vsel %vm615, %v604, %v11
    %617 = xla_tuple %v616
    %s618 = scalar_lea.vmem [#allocation3], 120
    %s620 = ssub.s32 256, 1
    %621 = vst [vmem:[%s618] sm:%s620] %v616
    %v622 = vld [vmem:[#allocation2] sm:$0xff]
    %v623 = vld [vmem:[#allocation2 + $0x8] sm:$0xff]
    %v624 = vld [vmem:[#allocation2 + $0x10] sm:$0xff]
    %v625 = vld [vmem:[#allocation2 + $0x18] sm:$0xff]
    %v626 = vld [vmem:[#allocation2 + $0x20] sm:$0xff]
    %v627 = vld [vmem:[#allocation2 + $0x28] sm:$0xff]
    %v628 = vld [vmem:[#allocation2 + $0x30] sm:$0xff]
    %v629 = vld [vmem:[#allocation2 + $0x38] sm:$0xff]
    %v630 = vld [vmem:[#allocation2 + $0x40] sm:$0xff]
    %v631 = vld [vmem:[#allocation2 + $0x48] sm:$0xff]
    %v632 = vld [vmem:[#allocation2 + $0x50] sm:$0xff]
    %v633 = vld [vmem:[#allocation2 + $0x58] sm:$0xff]
    %v634 = vld [vmem:[#allocation2 + $0x60] sm:$0xff]
    %v635 = vld [vmem:[#allocation2 + $0x68] sm:$0xff]
    %v636 = vld [vmem:[#allocation2 + $0x70] sm:$0xff]
    %v637 = vld [vmem:[#allocation2 + $0x78] sm:$0xff]
    %v638 = vld [vmem:[#allocation3] sm:$0xff]
    %v639 = vld [vmem:[#allocation3 + $0x8] sm:$0xff]
    %v640 = vld [vmem:[#allocation3 + $0x10] sm:$0xff]
    %v641 = vld [vmem:[#allocation3 + $0x18] sm:$0xff]
    %v642 = vld [vmem:[#allocation3 + $0x20] sm:$0xff]
    %v643 = vld [vmem:[#allocation3 + $0x28] sm:$0xff]
    %v644 = vld [vmem:[#allocation3 + $0x30] sm:$0xff]
    %v645 = vld [vmem:[#allocation3 + $0x38] sm:$0xff]
    %v646 = vld [vmem:[#allocation3 + $0x40] sm:$0xff]
    %v647 = vld [vmem:[#allocation3 + $0x48] sm:$0xff]
    %v648 = vld [vmem:[#allocation3 + $0x50] sm:$0xff]
    %v649 = vld [vmem:[#allocation3 + $0x58] sm:$0xff]
    %v650 = vld [vmem:[#allocation3 + $0x60] sm:$0xff]
    %v651 = vld [vmem:[#allocation3 + $0x68] sm:$0xff]
    %v652 = vld [vmem:[#allocation3 + $0x70] sm:$0xff]
    %v653 = vld [vmem:[#allocation3 + $0x78] sm:$0xff]
    %v654 = vmul.f32 %v622, %v638
    %v655 = vmul.f32 %v623, %v639
    %v656 = vmul.f32 %v624, %v640
    %v657 = vmul.f32 %v625, %v641
    %v658 = vmul.f32 %v626, %v642
    %v659 = vmul.f32 %v627, %v643
    %v660 = vmul.f32 %v628, %v644
    %v661 = vmul.f32 %v629, %v645
    %v662 = vmul.f32 %v630, %v646
    %v663 = vmul.f32 %v631, %v647
    %v664 = vmul.f32 %v632, %v648
    %v665 = vmul.f32 %v633, %v649
    %v666 = vmul.f32 %v634, %v650
    %v667 = vmul.f32 %v635, %v651
    %v668 = vmul.f32 %v636, %v652
    %v669 = vmul.f32 %v637, %v653
    %vm670 = vcmask 326656
    %v671 = vsel %vm670, %v654, 0.0
    %672 = vadd.xlane.f32.xlu0 %v671
    %v673 = vpop.xlane.xlu0 %672
    %v674 = vsel %vm670, %v655, 0.0
    %675 = vadd.xlane.f32.xlu0 %v674
    %v676 = vpop.xlane.xlu0 %675
    %v677 = vsel %vm670, %v656, 0.0
    %678 = vadd.xlane.f32.xlu0 %v677
    %v679 = vpop.xlane.xlu0 %678
    %v680 = vsel %vm670, %v657, 0.0
    %681 = vadd.xlane.f32.xlu0 %v680
    %v682 = vpop.xlane.xlu0 %681
    %v683 = vsel %vm670, %v658, 0.0
    %684 = vadd.xlane.f32.xlu0 %v683
    %v685 = vpop.xlane.xlu0 %684
    %v686 = vsel %vm670, %v659, 0.0
    %687 = vadd.xlane.f32.xlu0 %v686
    %v688 = vpop.xlane.xlu0 %687
    %v689 = vsel %vm670, %v660, 0.0
    %690 = vadd.xlane.f32.xlu0 %v689
    %v691 = vpop.xlane.xlu0 %690
    %v692 = vsel %vm670, %v661, 0.0
    %693 = vadd.xlane.f32.xlu0 %v692
    %v694 = vpop.xlane.xlu0 %693
    %v695 = vsel %vm670, %v662, 0.0
    %696 = vadd.xlane.f32.xlu0 %v695
    %v697 = vpop.xlane.xlu0 %696
    %v698 = vsel %vm670, %v663, 0.0
    %699 = vadd.xlane.f32.xlu0 %v698
    %v700 = vpop.xlane.xlu0 %699
    %v701 = vsel %vm670, %v664, 0.0
    %702 = vadd.xlane.f32.xlu0 %v701
    %v703 = vpop.xlane.xlu0 %702
    %v704 = vsel %vm670, %v665, 0.0
    %705 = vadd.xlane.f32.xlu0 %v704
    %v706 = vpop.xlane.xlu0 %705
    %v707 = vsel %vm670, %v666, 0.0
    %708 = vadd.xlane.f32.xlu0 %v707
    %v709 = vpop.xlane.xlu0 %708
    %v710 = vsel %vm670, %v667, 0.0
    %711 = vadd.xlane.f32.xlu0 %v710
    %v712 = vpop.xlane.xlu0 %711
    %v713 = vsel %vm670, %v668, 0.0
    %714 = vadd.xlane.f32.xlu0 %v713
    %v715 = vpop.xlane.xlu0 %714
    %v716 = vsel %vm670, %v669, 0.0
    %717 = vadd.xlane.f32.xlu0 %v716
    %v718 = vpop.xlane.xlu0 %717
    %v719 = vadd.f32 %v673, 3.5
    %v720 = vadd.f32 %v676, 3.5
    %v721 = vadd.f32 %v679, 3.5
    %v722 = vadd.f32 %v682, 3.5
    %v723 = vadd.f32 %v685, 3.5
    %v724 = vadd.f32 %v688, 3.5
    %v725 = vadd.f32 %v691, 3.5
    %v726 = vadd.f32 %v694, 3.5
    %v727 = vadd.f32 %v697, 3.5
    %v728 = vadd.f32 %v700, 3.5
    %v729 = vadd.f32 %v703, 3.5
    %v730 = vadd.f32 %v706, 3.5
    %v731 = vadd.f32 %v709, 3.5
    %v732 = vadd.f32 %v712, 3.5
    %v733 = vadd.f32 %v715, 3.5
    %v734 = vadd.f32 %v718, 3.5
    %vm735 = vcmask 7168
    %736 = vst.msk [vmem:[%s5] sm:$0xff] %vm735, %v719
    %737 = vst.msk [vmem:[%s5 + $0x8] sm:$0xff] %vm735, %v720
    %738 = vst.msk [vmem:[%s5 + $0x10] sm:$0xff] %vm735, %v721
    %739 = vst.msk [vmem:[%s5 + $0x18] sm:$0xff] %vm735, %v722
    %740 = vst.msk [vmem:[%s5 + $0x20] sm:$0xff] %vm735, %v723
    %741 = vst.msk [vmem:[%s5 + $0x28] sm:$0xff] %vm735, %v724
    %742 = vst.msk [vmem:[%s5 + $0x30] sm:$0xff] %vm735, %v725
    %743 = vst.msk [vmem:[%s5 + $0x38] sm:$0xff] %vm735, %v726
    %744 = vst.msk [vmem:[%s5 + $0x40] sm:$0xff] %vm735, %v727
    %745 = vst.msk [vmem:[%s5 + $0x48] sm:$0xff] %vm735, %v728
    %746 = vst.msk [vmem:[%s5 + $0x50] sm:$0xff] %vm735, %v729
    %747 = vst.msk [vmem:[%s5 + $0x58] sm:$0xff] %vm735, %v730
    %748 = vst.msk [vmem:[%s5 + $0x60] sm:$0xff] %vm735, %v731
    %749 = vst.msk [vmem:[%s5 + $0x68] sm:$0xff] %vm735, %v732
    %750 = vst.msk [vmem:[%s5 + $0x70] sm:$0xff] %vm735, %v733
    %751 = vst.msk [vmem:[%s5 + $0x78] sm:$0xff] %vm735, %v734
    // Predicated region
    $region18: #{_forward_pallas.2} parent=1 // pred_check
      _
    $region19: #{_forward_pallas.2} parent=1 // pred_check_branch
      %753 = sbr.rel (0) target = $region21
    $region20: #{_forward_pallas.2} parent=1 // pred_region
      _
    $region21: #{_forward_pallas.2} parent=1 // pred_fallthru
      _
    // Predicated region
    $region22: #{_forward_pallas.2} parent=1 // pred_check
      _
    $region23: #{_forward_pallas.2} parent=1 // pred_check_branch
      %755 = sbr.rel (0) target = $region25
    $region24: #{_forward_pallas.2} parent=1 // pred_region
      _
    $region25: #{_forward_pallas.2} parent=1 // pred_fallthru
      _

</llo_original>
